<compile_context>
chip_gen: v7x
topology: tpu7x:2x2x1
jax: 0.10.0
libtpu: 0.0.40
codegen_flags: <defaults>
</compile_context>

<pallas_src>
import functools

import numpy as np
import jax
import jax.numpy as jnp
from jax.experimental import pallas as pl
from jax.experimental.pallas import tpu as pltpu


_X_BLOCK_TARGET = 512 * 1024    # aim for >= this many bytes per x block
_X_BLOCK_BUDGET = 2 * 1024 * 1024   # and <= this (double-buffered by Pallas)


def _spatial_attention_kernel(x_ref, m_avg_ref, m_max_ref, b_ref, prior_ref,
                              o_ref, sum_ref, max_ref,
                              *, Bt, Ct, C, HW, R):
    """One grid step processes (Bt batch rows) x (Ct channels), lane-dense.

    x_ref:     (Bt, Ct, HW)   raw activations (VMEM), any float dtype
    m_avg_ref: (HW, HW)       banded conv weights for the mean map (VMEM, resident)
    m_max_ref: (HW, HW)       banded conv weights for the max map  (VMEM, resident)
    b_ref:     (1,)           conv bias (SMEM)
    prior_ref: (1, HW)        center-biased prior (VMEM, resident)
    o_ref:     (Bt, HW)       combined attention output (written at last C step)
    sum_ref:   (Bt, HW) f32   running channel-sum accumulator (VMEM scratch)
    max_ref:   (Bt, HW) f32   running channel-max accumulator (VMEM scratch)
    """
    c_step = pl.program_id(1)
    is_first = c_step == 0
    is_last = c_step == pl.num_programs(1) - 1

    # Chunk the compute over groups of R batch rows so the live set of
    # (R, HW) f32 slabs stays well under the 64-vreg register file even when
    # the DMA block (Bt, Ct, HW) is sized for HBM-roofline (~0.5-2 MiB).
    for r0 in range(0, Bt, R):
        rows = slice(r0, r0 + R)

        # --- Fused channel pooling: single pass over this channel tile -------
        x0 = x_ref[rows, 0, :].astype(jnp.float32)          # (R, HW)
        s, m = x0, x0
        for c in range(1, Ct):
            xc = x_ref[rows, c, :].astype(jnp.float32)
            s = s + xc
            m = jnp.maximum(m, xc)

        @pl.when(is_first)
        def _():
            sum_ref[rows, :] = s
            max_ref[rows, :] = m

        @pl.when(c_step > 0)
        def _():
            sum_ref[rows, :] = sum_ref[rows, :] + s
            max_ref[rows, :] = jnp.maximum(max_ref[rows, :], m)

        # --- Finalize: conv-as-matmul on the MXU + sigmoid/prior epilogue ----
        @pl.when(is_last)
        def _():
            avg = sum_ref[rows, :] * (1.0 / C)
            # 7x7 "same" conv == two (R, HW) x (HW, HW) banded matmuls; the
            # zero-padding / boundary handling is baked into the matrices.
            acc = (jnp.dot(avg, m_avg_ref[...],
                           preferred_element_type=jnp.float32)
                   + jnp.dot(max_ref[rows, :], m_max_ref[...],
                             preferred_element_type=jnp.float32)
                   + b_ref[0])
            att = jax.nn.sigmoid(acc) * prior_ref[...]       # exp -> EUP slot
            o_ref[rows, :] = att.astype(o_ref.dtype)         # unmasked 256-lane vst


def _pick_tiles(B, C, HW, itemsize):
    """Choose (Bt, Ct) so the per-step x block is ~0.5-2 MiB and sublane-friendly."""
    per_pix = HW * itemsize
    # Channel tile: keep all of C in one block when it fits the budget,
    # otherwise a multiple-of-8 divisor of C (C becomes a reduction grid axis).
    if C * per_pix <= _X_BLOCK_BUDGET:
        Ct = C
    else:
        cands = [d for d in range(8, C + 1, 8)
                 if C % d == 0 and d * per_pix <= _X_BLOCK_BUDGET]
        # TODO(synk): if C has no multiple-of-8 divisor that fits, pad C in the
        # wrapper instead of falling back to a whole-C block.
        Ct = max(cands) if cands else C
    per_b = Ct * per_pix
    divs = [d for d in range(1, B + 1) if B % d == 0 and d * per_b <= _X_BLOCK_BUDGET]
    if not divs:
        divs = [1]
    # Prefer the smallest multiple-of-8 divisor whose block still reaches the
    # target size (full sublane occupancy + more grid steps for v7x's 2 TCs);
    # otherwise the largest that fits (Bt=B / grid=(1,) is fine on 1-TC chips).
    hit = [d for d in divs if d % 8 == 0 and d * per_b >= _X_BLOCK_TARGET]
    if hit:
        return min(hit), Ct
    mult8 = [d for d in divs if d % 8 == 0]
    return (max(mult8) if mult8 else max(divs)), Ct


def _pick_row_chunk(Bt):
    """Rows per in-kernel compute chunk (bounds the live vreg set)."""
    if Bt <= 16:
        return Bt
    for r in (16, 8):
        if Bt % r == 0:
            return r
    for r in range(16, 0, -1):
        if Bt % r == 0:
            return r
    return Bt


def spatial_attention(x, conv_w, conv_b, kernel_size=7):
    """x: (B, C, H, W) float.  Returns combined attention (B, 1, H, W) float32."""
    B, C, H, W = x.shape
    K = kernel_size
    P = K // 2
    HW = H * W

    # --- Center-biased prior, lane-dense (1, HW) ------------------------------
    ys = jnp.linspace(-1.0, 1.0, H)
    xs = jnp.linspace(-1.0, 1.0, W)
    yg, xg = jnp.meshgrid(ys, xs, indexing="ij")
    prior = jnp.exp(-(xg ** 2 + yg ** 2) / 0.5).astype(jnp.float32).reshape(1, HW)

    # --- Conv as two constant banded (HW, HW) matrices (boundary zeros baked in)
    # out_flat[p] = sum_q avg_flat[q] * M_avg[q, p] + mx_flat[q] * M_max[q, p] + b
    # TODO(synk): for large H*W these dense banded weights (HW^2 * 4 B) no longer
    # fit VMEM; tile the band or fall back to the shifted-slice VPU conv there.
    pix = jnp.arange(HW, dtype=jnp.int32)
    row = pix // W
    col = pix % W
    di = row[:, None] - row[None, :] + P          # rows: input pixel q, cols: output p
    dj = col[:, None] - col[None, :] + P
    valid = (di >= 0) & (di < K) & (dj >= 0) & (dj < K)
    kidx = jnp.where(valid, di * K + dj, 0)
    w_avg = conv_w[0, 0].reshape(-1).astype(jnp.float32)     # in-channel 0 = mean
    w_max = conv_w[0, 1].reshape(-1).astype(jnp.float32)     # in-channel 1 = max
    m_avg = jnp.where(valid, w_avg[kidx], 0.0)               # (HW, HW) f32
    m_max = jnp.where(valid, w_max[kidx], 0.0)               # (HW, HW) f32

    b_flat = conv_b.reshape(-1).astype(jnp.float32)          # (1,)

    # Free, contiguous reshape; no HBM pad, no dtype copy (bf16 inputs stay
    # bf16 in HBM and are upcast per-channel inside the kernel).
    x_flat = x.reshape(B, C, HW)
    itemsize = jnp.dtype(x.dtype).itemsize

    Bt, Ct = _pick_tiles(B, C, HW, itemsize)
    R = _pick_row_chunk(Bt)
    grid = (B // Bt, C // Ct)            # channels = trailing reduction axis

    kernel = functools.partial(_spatial_attention_kernel,
                               Bt=Bt, Ct=Ct, C=C, HW=HW, R=R)

    # Explicit VMEM budget (keeps v7x's 64 MiB in mind; double-buffered inputs).
    vmem_est = (2 * Bt * Ct * HW * itemsize      # x block
                + 2 * 2 * HW * HW * 4            # resident banded conv weights
                + 2 * 2 * HW * 4                 # prior
                + 2 * Bt * HW * 4                # out block
                + 2 * Bt * HW * 4)               # sum/max scratch
    vmem_limit = int(min(max(2 * vmem_est, 32 * 1024 * 1024), 64 * 1024 * 1024))

    out = pl.pallas_call(
        kernel,
        out_shape=jax.ShapeDtypeStruct((B, HW), jnp.float32),
        grid_spec=pltpu.PrefetchScalarGridSpec(
            num_scalar_prefetch=0,
            grid=grid,
            in_specs=[
                pl.BlockSpec((Bt, Ct, HW), lambda b, c: (b, c, 0)),
                pl.BlockSpec((HW, HW), lambda b, c: (0, 0)),
                pl.BlockSpec((HW, HW), lambda b, c: (0, 0)),
                pl.BlockSpec(memory_space=pltpu.MemorySpace.SMEM),
                pl.BlockSpec((1, HW), lambda b, c: (0, 0)),
            ],
            out_specs=pl.BlockSpec((Bt, HW), lambda b, c: (b, 0)),
            scratch_shapes=[pltpu.VMEM((Bt, HW), jnp.float32),
                            pltpu.VMEM((Bt, HW), jnp.float32)],
        ),
        compiler_params=pltpu.CompilerParams(
            dimension_semantics=("parallel", "arbitrary"),
            vmem_limit_bytes=vmem_limit),
    )(x_flat, m_avg, m_max, b_flat, prior)

    return out.reshape(B, 1, H, W)


def _reference(x, conv_w, conv_b, kernel_size=7):
    """Plain-JAX reference mirroring the PyTorch forward."""
    B, C, H, W = x.shape
    K = kernel_size
    avg = jnp.mean(x, axis=1, keepdims=True)
    mx = jnp.max(x, axis=1, keepdims=True)
    pooled = jnp.concatenate([avg, mx], axis=1)
    conv = jax.lax.conv_general_dilated(
        pooled, conv_w, window_strides=(1, 1),
        padding=[(K // 2, K // 2), (K // 2, K // 2)],
        dimension_numbers=("NCHW", "OIHW", "NCHW"),
        precision=jax.lax.Precision.HIGHEST,
    ) + conv_b.reshape(1, 1, 1, 1)
    ys = jnp.linspace(-1.0, 1.0, H)
    xs = jnp.linspace(-1.0, 1.0, W)
    yg, xg = jnp.meshgrid(ys, xs, indexing="ij")
    prior = jnp.exp(-(xg ** 2 + yg ** 2) / 0.5)
    return jax.nn.sigmoid(conv) * prior[None, None]


if __name__ == "__main__":
    key = jax.random.PRNGKey(0)
    k_x, k_w, k_b = jax.random.split(key, 3)

    B, C, H, W = 2, 4, 16, 16
    K = 7

    x = jax.random.normal(k_x, (B, C, H, W), dtype=jnp.float32)

    # Deterministic conv parameters (PyTorch-style uniform init bounds).
    fan_in = 2 * K * K
    bound = 1.0 / np.sqrt(fan_in)
    conv_w = jax.random.uniform(k_w, (1, 2, K, K), minval=-bound, maxval=bound,
                                dtype=jnp.float32)
    conv_b = jax.random.uniform(k_b, (1,), minval=-bound, maxval=bound,
                                dtype=jnp.float32)

    out = spatial_attention(x, conv_w, conv_b, kernel_size=K)
    out = jax.block_until_ready(out)

    ref = _reference(x, conv_w, conv_b, kernel_size=K)
    assert out.shape == (B, 1, H, W)
    max_err = float(np.max(np.abs(np.asarray(out) - np.asarray(ref))))
    assert np.allclose(np.asarray(out), np.asarray(ref), atol=2e-3, rtol=2e-3), max_err

    print("KERNEL_OK")
</pallas_src>

<mosaic_0001>
module attributes {stable_mosaic.version = 11 : i64} {
  func.func @_spatial_attention_kernel(%arg0: i32, %arg1: i32, %arg2: memref<2x4x256xf32, #tpu.memory_space<vmem>>, %arg3: memref<256x256xf32, #tpu.memory_space<vmem>>, %arg4: memref<256x256xf32, #tpu.memory_space<vmem>>, %arg5: memref<1xf32, #tpu.memory_space<smem>>, %arg6: memref<1x256xf32, #tpu.memory_space<vmem>>, %arg7: memref<2x256xf32, #tpu.memory_space<vmem>>, %arg8: memref<2x256xf32, #tpu.memory_space<vmem>>, %arg9: memref<2x256xf32, #tpu.memory_space<vmem>>) attributes {dimension_semantics = [#tpu.dimension_semantics<parallel>, #tpu.dimension_semantics<arbitrary>], iteration_bounds = array<i64: 1, 1>, scalar_prefetch = 0 : i64, scratch_operands = 2 : i64, tpu.core_type = #tpu.core_type<tc>, window_params = [{transform_indices = @transform_0, window_bounds = array<i64: 2, 4, 256>}, {pipeline_mode = #tpu.pipeline_mode<synchronous>, transform_indices = @transform_1, window_bounds = array<i64: 256, 256>}, {pipeline_mode = #tpu.pipeline_mode<synchronous>, transform_indices = @transform_2, window_bounds = array<i64: 256, 256>}, {transform_indices = @transform_3, window_bounds = array<i64: 1>}, {pipeline_mode = #tpu.pipeline_mode<synchronous>, transform_indices = @transform_4, window_bounds = array<i64: 1, 256>}, {transform_indices = @transform_5, window_bounds = array<i64: 2, 256>}]} {
    %c0_i32 = arith.constant 0 : i32
    %0 = arith.cmpi eq, %arg1, %c0_i32 : i32
    %c0_i32_0 = arith.constant 0 : i32
    %1 = arith.cmpi eq, %arg1, %c0_i32_0 : i32
    %c0 = arith.constant 0 : index
    %c0_1 = arith.constant 0 : index
    %c0_2 = arith.constant 0 : index
    %2 = vector.load %arg2[%c0, %c0_1, %c0_2] : memref<2x4x256xf32, #tpu.memory_space<vmem>>, vector<2x1x256xf32>
    %3 = vector.shape_cast %2 : vector<2x1x256xf32> to vector<2x256xf32>
    %c0_3 = arith.constant 0 : index
    %c1 = arith.constant 1 : index
    %c0_4 = arith.constant 0 : index
    %4 = vector.load %arg2[%c0_3, %c1, %c0_4] : memref<2x4x256xf32, #tpu.memory_space<vmem>>, vector<2x1x256xf32>
    %5 = vector.shape_cast %4 : vector<2x1x256xf32> to vector<2x256xf32>
    %6 = arith.addf %3, %5 : vector<2x256xf32>
    %7 = arith.maximumf %3, %5 : vector<2x256xf32>
    %c0_5 = arith.constant 0 : index
    %c2 = arith.constant 2 : index
    %c0_6 = arith.constant 0 : index
    %8 = vector.load %arg2[%c0_5, %c2, %c0_6] : memref<2x4x256xf32, #tpu.memory_space<vmem>>, vector<2x1x256xf32>
    %9 = vector.shape_cast %8 : vector<2x1x256xf32> to vector<2x256xf32>
    %10 = arith.addf %6, %9 : vector<2x256xf32>
    %11 = arith.maximumf %7, %9 : vector<2x256xf32>
    %c0_7 = arith.constant 0 : index
    %c3 = arith.constant 3 : index
    %c0_8 = arith.constant 0 : index
    %12 = vector.load %arg2[%c0_7, %c3, %c0_8] : memref<2x4x256xf32, #tpu.memory_space<vmem>>, vector<2x1x256xf32>
    %13 = vector.shape_cast %12 : vector<2x1x256xf32> to vector<2x256xf32>
    %14 = arith.addf %10, %13 : vector<2x256xf32>
    %15 = arith.maximumf %11, %13 : vector<2x256xf32>
    %16 = arith.extui %0 : i1 to i32
    %c0_i32_9 = arith.constant 0 : i32
    %17 = arith.cmpi ne, %16, %c0_i32_9 : i32
    scf.if %17 {
      %c0_13 = arith.constant 0 : index
      %c0_14 = arith.constant 0 : index
      %23 = vector.load %arg8[%c0_13, %c0_14] : memref<2x256xf32, #tpu.memory_space<vmem>>, vector<2x256xf32>
      tpu.vector_store %arg8[%c0_13, %c0_14], %14 {strides = array<i32>} : memref<2x256xf32, #tpu.memory_space<vmem>>, vector<2x256xf32>,
      %c0_15 = arith.constant 0 : index
      %c0_16 = arith.constant 0 : index
      %24 = vector.load %arg9[%c0_15, %c0_16] : memref<2x256xf32, #tpu.memory_space<vmem>>, vector<2x256xf32>
      tpu.vector_store %arg9[%c0_15, %c0_16], %15 {strides = array<i32>} : memref<2x256xf32, #tpu.memory_space<vmem>>, vector<2x256xf32>,
    } else {
    }
    %c0_i32_10 = arith.constant 0 : i32
    %18 = arith.cmpi sgt, %arg1, %c0_i32_10 : i32
    %19 = arith.extui %18 : i1 to i32
    %c0_i32_11 = arith.constant 0 : i32
    %20 = arith.cmpi ne, %19, %c0_i32_11 : i32
    scf.if %20 {
      %c0_13 = arith.constant 0 : index
      %c0_14 = arith.constant 0 : index
      %23 = vector.load %arg8[%c0_13, %c0_14] : memref<2x256xf32, #tpu.memory_space<vmem>>, vector<2x256xf32>
      %24 = arith.addf %23, %14 : vector<2x256xf32>
      %c0_15 = arith.constant 0 : index
      %c0_16 = arith.constant 0 : index
      %25 = vector.load %arg8[%c0_15, %c0_16] : memref<2x256xf32, #tpu.memory_space<vmem>>, vector<2x256xf32>
      tpu.vector_store %arg8[%c0_15, %c0_16], %24 {strides = array<i32>} : memref<2x256xf32, #tpu.memory_space<vmem>>, vector<2x256xf32>,
      %c0_17 = arith.constant 0 : index
      %c0_18 = arith.constant 0 : index
      %26 = vector.load %arg9[%c0_17, %c0_18] : memref<2x256xf32, #tpu.memory_space<vmem>>, vector<2x256xf32>
      %27 = arith.maximumf %26, %15 : vector<2x256xf32>
      %c0_19 = arith.constant 0 : index
      %c0_20 = arith.constant 0 : index
      %28 = vector.load %arg9[%c0_19, %c0_20] : memref<2x256xf32, #tpu.memory_space<vmem>>, vector<2x256xf32>
      tpu.vector_store %arg9[%c0_19, %c0_20], %27 {strides = array<i32>} : memref<2x256xf32, #tpu.memory_space<vmem>>, vector<2x256xf32>,
    } else {
    }
    %21 = arith.extui %1 : i1 to i32
    %c0_i32_12 = arith.constant 0 : i32
    %22 = arith.cmpi ne, %21, %c0_i32_12 : i32
    scf.if %22 {
      %c0_13 = arith.constant 0 : index
      %c0_14 = arith.constant 0 : index
      %23 = vector.load %arg8[%c0_13, %c0_14] : memref<2x256xf32, #tpu.memory_space<vmem>>, vector<2x256xf32>
      %cst = arith.constant 2.500000e-01 : f32
      %24 = vector.broadcast %cst : f32 to vector<2x256xf32>
      %25 = arith.mulf %23, %24 : vector<2x256xf32>
      %c0_15 = arith.constant 0 : index
      %c0_16 = arith.constant 0 : index
      %26 = vector.load %arg3[%c0_15, %c0_16] : memref<256x256xf32, #tpu.memory_space<vmem>>, vector<256x256xf32>
      %cst_17 = arith.constant dense<0.000000e+00> : vector<2x256xf32>
      %27 = tpu.matmul %25, %26, %cst_17 {dimension_numbers = #tpu.dot_dimension_numbers<[1], [0], [0], [1], [0, 0, 1, 1], [], []>} : vector<2x256xf32>, vector<256x256xf32>, vector<2x256xf32> -> vector<2x256xf32>
      %c0_18 = arith.constant 0 : index
      %c0_19 = arith.constant 0 : index
      %28 = vector.load %arg9[%c0_18, %c0_19] : memref<2x256xf32, #tpu.memory_space<vmem>>, vector<2x256xf32>
      %c0_20 = arith.constant 0 : index
      %c0_21 = arith.constant 0 : index
      %29 = vector.load %arg4[%c0_20, %c0_21] : memref<256x256xf32, #tpu.memory_space<vmem>>, vector<256x256xf32>
      %cst_22 = arith.constant dense<0.000000e+00> : vector<2x256xf32>
      %30 = tpu.matmul %28, %29, %cst_22 {dimension_numbers = #tpu.dot_dimension_numbers<[1], [0], [0], [1], [0, 0, 1, 1], [], []>} : vector<2x256xf32>, vector<256x256xf32>, vector<2x256xf32> -> vector<2x256xf32>
      %31 = arith.addf %27, %30 : vector<2x256xf32>
      %c0_23 = arith.constant 0 : index
      %32 = memref.load %arg5[%c0_23] : memref<1xf32, #tpu.memory_space<smem>>
      %33 = vector.broadcast %32 : f32 to vector<2x256xf32>
      %34 = arith.addf %31, %33 : vector<2x256xf32>
      %35 = arith.negf %34 : vector<2x256xf32>
      %36 = math.exp %35 : vector<2x256xf32>
      %cst_24 = arith.constant 1.000000e+00 : f32
      %37 = vector.broadcast %cst_24 : f32 to vector<2x256xf32>
      %38 = arith.addf %37, %36 : vector<2x256xf32>
      %39 = arith.divf %37, %38 : vector<2x256xf32>
      %c0_25 = arith.constant 0 : index
      %c0_26 = arith.constant 0 : index
      %40 = vector.load %arg6[%c0_25, %c0_26] : memref<1x256xf32, #tpu.memory_space<vmem>>, vector<1x256xf32>
      %41 = vector.broadcast %40 : vector<1x256xf32> to vector<2x256xf32>
      %42 = arith.mulf %39, %41 : vector<2x256xf32>
      %c0_27 = arith.constant 0 : index
      %c0_28 = arith.constant 0 : index
      %43 = vector.load %arg7[%c0_27, %c0_28] : memref<2x256xf32, #tpu.memory_space<vmem>>, vector<2x256xf32>
      tpu.vector_store %arg7[%c0_27, %c0_28], %42 {strides = array<i32>} : memref<2x256xf32, #tpu.memory_space<vmem>>, vector<2x256xf32>,
    } else {
    }
    return
  }
  func.func @transform_0(%arg0: i32, %arg1: i32) -> (i32, i32, i32) {
    %c0_i32 = arith.constant 0 : i32
    %c0_i32_0 = arith.constant 0 : i32
    return %arg0, %arg1, %c0_i32 : i32, i32, i32
  }
  func.func @transform_1(%arg0: i32, %arg1: i32) -> (i32, i32) {
    %c0_i32 = arith.constant 0 : i32
    %c0_i32_0 = arith.constant 0 : i32
    %c0_i32_1 = arith.constant 0 : i32
    return %c0_i32, %c0_i32_0 : i32, i32
  }
  func.func @transform_2(%arg0: i32, %arg1: i32) -> (i32, i32) {
    %c0_i32 = arith.constant 0 : i32
    %c0_i32_0 = arith.constant 0 : i32
    %c0_i32_1 = arith.constant 0 : i32
    return %c0_i32, %c0_i32_0 : i32, i32
  }
  func.func @transform_3(%arg0: i32, %arg1: i32) -> i32 {
    %c0_i32 = arith.constant 0 : i32
    %c0_i32_0 = arith.constant 0 : i32
    return %c0_i32 : i32
  }
  func.func @transform_4(%arg0: i32, %arg1: i32) -> (i32, i32) {
    %c0_i32 = arith.constant 0 : i32
    %c0_i32_0 = arith.constant 0 : i32
    %c0_i32_1 = arith.constant 0 : i32
    return %c0_i32, %c0_i32_0 : i32, i32
  }
  func.func @transform_5(%arg0: i32, %arg1: i32) -> (i32, i32) {
    %c0_i32 = arith.constant 0 : i32
    %c0_i32_0 = arith.constant 0 : i32
    return %arg0, %c0_i32 : i32, i32
  }
}

</mosaic_0001>

<llo_original>
// kernel: tpu_custom_call.1
$region0: #{tpu_custom_call.1}
  #allocation0 [shape = 'u32[]', space=smem, size = 0x4, offset = 0x4, fixed_abs, tag = 'smem constant byte address 0x4 - core index']
  #allocation1 [shape = 'u32[144,128]{1,0:T(1,128)}', space=vmem, size = 0x12000, scoped, tag = 'internal scratch']
  #allocation2 [shape = 'f32[2,256]{1,0:T(2,128)}', space=vmem, size = 0x800, scoped, tag = 'scratch operand']
  #allocation3 [shape = 'f32[2,256]{1,0:T(2,128)}', space=vmem, size = 0x800, scoped, tag = 'scratch operand']
  #allocation4 [shape = 'f32[1]{0:T(128)S(6)}', space=smem, size = 0x200, scoped, tag = 'scoped memory for tpu_custom_call.1']
  %s0 = inlined_call_operand.hbm [shape: f32[2,4,256], index: 0, kind: input, shape index: {}]
  %s1 = inlined_call_operand.hbm [shape: f32[256,256], index: 1, kind: input, shape index: {}]
  %s2 = inlined_call_operand.hbm [shape: f32[256,256], index: 2, kind: input, shape index: {}]
  %s3 = inlined_call_operand.<no memory space> [shape: f32[1], index: 3, kind: input, shape index: {}]
  %s4 = inlined_call_operand.vmem [shape: f32[1,256], index: 4, kind: input, shape index: {}]
  %s5 = inlined_call_operand.hbm [shape: f32[2,256], index: 5, kind: output, shape index: {}]
  %s6 = sld [smem:[#allocation0]]
  $region54: #{tpu_custom_call.1} parent=0
    _
  %s8 = ssub.s32 1, %s6
  %s9 = scalar_select 0, %s8, %s6
  %10 = sst [smem:[#allocation4]] %s3
  $region1: #{tpu_custom_call.1} parent=0
    #allocation5 [shape = 'u8[8192]{0}', space=vmem, size = 0x2000, scoped, tag = 'input window, operand 0, single buffered']
    #allocation6 [shape = 's32[1]{0}', space=sflag, size = 0x4, scoped, tag = 'scoped memory for tpu_custom_call.1']
    #allocation7 [shape = 's32[1]{0}', space=sflag, size = 0x4, scoped, tag = 'scoped memory for tpu_custom_call.1']
    #allocation8 [shape = 'u8[262144]{0}', space=vmem, size = 0x40000, scoped, tag = 'input window, operand 1, single buffered']
    #allocation9 [shape = 's32[1]{0}', space=sflag, size = 0x4, scoped, tag = 'scoped memory for tpu_custom_call.1']
    #allocation10 [shape = 'u8[262144]{0}', space=vmem, size = 0x40000, scoped, tag = 'input window, operand 2, single buffered']
    #allocation11 [shape = 'u8[2048]{0}', space=vmem, size = 0x800, scoped, tag = 'output window, operand 0, single buffered']
    %11 = vsyncpa [#allocation6], 0
    %12 = vsyncpa [#allocation9], 0
    %13 = vsyncpa [#allocation7], 0
    // Predicated region
    $region2: #{tpu_custom_call.1} parent=1 // pred_check
      _
    $region3: #{tpu_custom_call.1} parent=1 // pred_check_branch
      %15 = sbr.rel (0) target = $region5
    $region4: #{tpu_custom_call.1} parent=1 // pred_region
      %s17 = ssub.s32 256, 256
      %18 = vsyncadd [#allocation6], %s17
      %s19 = sshll.u32 [#allocation5], 4
      %s20 = int_to_ptr.vmem [resolvable:$true] %s19
      %25 = dma.hbm_to_vmem [thread:$0]  %s0, 256, %s20, [#allocation6], 128, 128, 8
    $region5: #{tpu_custom_call.1} parent=1 // pred_fallthru
      _
    // Predicated region
    $region6: #{tpu_custom_call.1} parent=1 // pred_check
      _
    $region7: #{tpu_custom_call.1} parent=1 // pred_check_branch
      %27 = sbr.rel (0) target = $region9
    $region8: #{tpu_custom_call.1} parent=1 // pred_region
      %s29 = ssub.s32 8192, 8192
      %30 = vsyncadd [#allocation9], %s29
      %s31 = sshll.u32 [#allocation8], 4
      %s32 = int_to_ptr.vmem [resolvable:$true] %s31
      %37 = dma.hbm_to_vmem [thread:$0]  %s1, 8192, %s32, [#allocation9], 256, 256, 16
    $region9: #{tpu_custom_call.1} parent=1 // pred_fallthru
      _
    // Predicated region
    $region10: #{tpu_custom_call.1} parent=1 // pred_check
      _
    $region11: #{tpu_custom_call.1} parent=1 // pred_check_branch
      %39 = sbr.rel (0) target = $region13
    $region12: #{tpu_custom_call.1} parent=1 // pred_region
      %s41 = ssub.s32 8192, 8192
      %42 = vsyncadd [#allocation9], %s41
      %s43 = sshll.u32 [#allocation10], 4
      %s44 = int_to_ptr.vmem [resolvable:$true] %s43
      %49 = dma.hbm_to_vmem [thread:$0]  %s2, 8192, %s44, [#allocation9], 256, 256, 16
    $region13: #{tpu_custom_call.1} parent=1 // pred_fallthru
      _
    // Predicated region
    $region14: #{tpu_custom_call.1} parent=1 // pred_check
      _
    $region15: #{tpu_custom_call.1} parent=1 // pred_check_branch
      %51 = sbr.rel (0) target = $region17
    $region16: #{tpu_custom_call.1} parent=1 // pred_region
      _
    $region17: #{tpu_custom_call.1} parent=1 // pred_fallthru
      _
    // Predicated region
    $region18: #{tpu_custom_call.1} parent=1 // pred_check
      _
    $region19: #{tpu_custom_call.1} parent=1 // pred_check_branch
      %53 = sbr.rel (0) target = $region21
    $region20: #{tpu_custom_call.1} parent=1 // pred_region
      _
    $region21: #{tpu_custom_call.1} parent=1 // pred_fallthru
      _
    // Predicated region
    $region22: #{tpu_custom_call.1} parent=1 // pred_check
      _
    $region23: #{tpu_custom_call.1} parent=1 // pred_check_branch
      %55 = sbr.rel (0) target = $region25
    $region24: #{tpu_custom_call.1} parent=1 // pred_region
      %56 = dma.done [#allocation6], 256
    $region25: #{tpu_custom_call.1} parent=1 // pred_fallthru
      _
    // Predicated region
    $region26: #{tpu_custom_call.1} parent=1 // pred_check
      _
    $region27: #{tpu_custom_call.1} parent=1 // pred_check_branch
      %58 = sbr.rel (0) target = $region29
    $region28: #{tpu_custom_call.1} parent=1 // pred_region
      %59 = dma.done [#allocation9], 8192
    $region29: #{tpu_custom_call.1} parent=1 // pred_fallthru
      _
    // Predicated region
    $region30: #{tpu_custom_call.1} parent=1 // pred_check
      _
    $region31: #{tpu_custom_call.1} parent=1 // pred_check_branch
      %61 = sbr.rel (0) target = $region33
    $region32: #{tpu_custom_call.1} parent=1 // pred_region
      %62 = dma.done [#allocation9], 8192
    $region33: #{tpu_custom_call.1} parent=1 // pred_fallthru
      _
    %p63 = scmp.eq.s32.totalorder 0, 0
    %v64 = vld [vmem:[#allocation5] ss:$4 sm:$0x3]
    %s65 = scalar_lea.vmem [#allocation5], 8
    %v66 = vld [vmem:[%s65] ss:$4 sm:$0x3]
    %s67 = scalar_lea.vmem [#allocation5], 1
    %v68 = vld [vmem:[%s67] ss:$4 sm:$0x3]
    %s69 = scalar_lea.vmem [#allocation5], 9
    %v70 = vld [vmem:[%s69] ss:$4 sm:$0x3]
    %v71 = vadd.f32 %v64, %v68
    %v72 = vadd.f32 %v66, %v70
    %v73 = vmax.f32 %v64, %v68
    %v74 = vmax.f32 %v66, %v70
    %s75 = scalar_lea.vmem [#allocation5], 2
    %v76 = vld [vmem:[%s75] ss:$4 sm:$0x3]
    %s77 = scalar_lea.vmem [#allocation5], 10
    %v78 = vld [vmem:[%s77] ss:$4 sm:$0x3]
    %v79 = vadd.f32 %v71, %v76
    %v80 = vadd.f32 %v72, %v78
    %v81 = vmax.f32 %v73, %v76
    %v82 = vmax.f32 %v74, %v78
    %s83 = scalar_lea.vmem [#allocation5], 3
    %v84 = vld [vmem:[%s83] ss:$4 sm:$0x3]
    %s85 = scalar_lea.vmem [#allocation5], 11
    %v86 = vld [vmem:[%s85] ss:$4 sm:$0x3]
    %v87 = vadd.f32 %v79, %v84
    %v88 = vadd.f32 %v80, %v86
    %v89 = vmax.f32 %v81, %v84
    %v90 = vmax.f32 %v82, %v86
    // Predicated region
    $region34: #{tpu_custom_call.1} parent=1 // pred_check
      %p91 = pneg %p63
    $region35: #{tpu_custom_call.1} parent=1 // pred_check_branch
      %93 = sbr.rel (%p91) target = $region37
    $region36: #{tpu_custom_call.1} parent=1 // pred_region
      %v96 = vcombine.low %v87, %v88
      %v98 = vunpack.c.l.s4 1935823168
      %v99 = vunpack.c.0.s8 %v98
      %v100 = vlaneseq
      %v101 = vshrl.u32 %v100, 7
      %v102 = vsub.s32 %v99, %v101
      %v103 = vrot.slane %v96, %v102
      %105 = vst [vmem:[#allocation2] sm:$0xf] %v103
      %v108 = vcombine.low %v89, %v90
      %v110 = vunpack.c.l.s4 1935823168
      %v111 = vunpack.c.0.s8 %v110
      %v112 = vlaneseq
      %v113 = vshrl.u32 %v112, 7
      %v114 = vsub.s32 %v111, %v113
      %v115 = vrot.slane %v108, %v114
      %117 = vst [vmem:[#allocation3] sm:$0xf] %v115
    $region37: #{tpu_custom_call.1} parent=1 // pred_fallthru
      _
    %p118 = scmp.gt.s32.totalorder 0, 0
    // Predicated region
    $region38: #{tpu_custom_call.1} parent=1 // pred_check
      %p119 = pneg %p118
    $region39: #{tpu_custom_call.1} parent=1 // pred_check_branch
      %121 = sbr.rel (%p119) target = $region41
    $region40: #{tpu_custom_call.1} parent=1 // pred_region
      %v122 = vld [vmem:[#allocation2] sm:$0xf]
      %v125 = vcombine.low %v87, %v88
      %v127 = vunpack.c.l.s4 1935823168
      %v128 = vunpack.c.0.s8 %v127
      %v129 = vlaneseq
      %v130 = vshrl.u32 %v129, 7
      %v131 = vsub.s32 %v128, %v130
      %v132 = vrot.slane %v125, %v131
      %v134 = vadd.f32 %v122, %v132
      %135 = vst [vmem:[#allocation2] sm:$0xf] %v134
      %v136 = vld [vmem:[#allocation3] sm:$0xf]
      %v139 = vcombine.low %v89, %v90
      %v141 = vunpack.c.l.s4 1935823168
      %v142 = vunpack.c.0.s8 %v141
      %v143 = vlaneseq
      %v144 = vshrl.u32 %v143, 7
      %v145 = vsub.s32 %v142, %v144
      %v146 = vrot.slane %v139, %v145
      %v148 = vmax.f32 %v136, %v146
      %149 = vst [vmem:[#allocation3] sm:$0xf] %v148
    $region41: #{tpu_custom_call.1} parent=1 // pred_fallthru
      _
    // Predicated region
    $region42: #{tpu_custom_call.1} parent=1 // pred_check
      %p150 = pneg %p63
    $region43: #{tpu_custom_call.1} parent=1 // pred_check_branch
      %152 = sbr.rel (%p150) target = $region45
    $region44: #{tpu_custom_call.1} parent=1 // pred_region
      %v153 = vld [vmem:[#allocation2] sm:$0xf]
      %v154 = vmul.f32 %v153, 0.25
      %v155 = vld [vmem:[#allocation8] sm:$0xff]
      %v156 = vld [vmem:[#allocation8 + $0x8] sm:$0xff]
      %v157 = vld [vmem:[#allocation8 + $0x10] sm:$0xff]
      %v158 = vld [vmem:[#allocation8 + $0x18] sm:$0xff]
      %v159 = vld [vmem:[#allocation8 + $0x20] sm:$0xff]
      %v160 = vld [vmem:[#allocation8 + $0x28] sm:$0xff]
      %v161 = vld [vmem:[#allocation8 + $0x30] sm:$0xff]
      %v162 = vld [vmem:[#allocation8 + $0x38] sm:$0xff]
      %v163 = vld [vmem:[#allocation8 + $0x40] sm:$0xff]
      %v164 = vld [vmem:[#allocation8 + $0x48] sm:$0xff]
      %v165 = vld [vmem:[#allocation8 + $0x50] sm:$0xff]
      %v166 = vld [vmem:[#allocation8 + $0x58] sm:$0xff]
      %v167 = vld [vmem:[#allocation8 + $0x60] sm:$0xff]
      %v168 = vld [vmem:[#allocation8 + $0x68] sm:$0xff]
      %v169 = vld [vmem:[#allocation8 + $0x70] sm:$0xff]
      %v170 = vld [vmem:[#allocation8 + $0x78] sm:$0xff]
      %v171 = vld [vmem:[#allocation8 + $0x80] sm:$0xff]
      %v172 = vld [vmem:[#allocation8 + $0x88] sm:$0xff]
      %v173 = vld [vmem:[#allocation8 + $0x90] sm:$0xff]
      %v174 = vld [vmem:[#allocation8 + $0x98] sm:$0xff]
      %v175 = vld [vmem:[#allocation8 + $0xa0] sm:$0xff]
      %v176 = vld [vmem:[#allocation8 + $0xa8] sm:$0xff]
      %v177 = vld [vmem:[#allocation8 + $0xb0] sm:$0xff]
      %v178 = vld [vmem:[#allocation8 + $0xb8] sm:$0xff]
      %v179 = vld [vmem:[#allocation8 + $0xc0] sm:$0xff]
      %v180 = vld [vmem:[#allocation8 + $0xc8] sm:$0xff]
      %v181 = vld [vmem:[#allocation8 + $0xd0] sm:$0xff]
      %v182 = vld [vmem:[#allocation8 + $0xd8] sm:$0xff]
      %v183 = vld [vmem:[#allocation8 + $0xe0] sm:$0xff]
      %v184 = vld [vmem:[#allocation8 + $0xe8] sm:$0xff]
      %v185 = vld [vmem:[#allocation8 + $0xf0] sm:$0xff]
      %v186 = vld [vmem:[#allocation8 + $0xf8] sm:$0xff]
      %v187 = vld [vmem:[#allocation8 + $0x100] sm:$0xff]
      %v188 = vld [vmem:[#allocation8 + $0x108] sm:$0xff]
      %v189 = vld [vmem:[#allocation8 + $0x110] sm:$0xff]
      %v190 = vld [vmem:[#allocation8 + $0x118] sm:$0xff]
      %v191 = vld [vmem:[#allocation8 + $0x120] sm:$0xff]
      %v192 = vld [vmem:[#allocation8 + $0x128] sm:$0xff]
      %v193 = vld [vmem:[#allocation8 + $0x130] sm:$0xff]
      %v194 = vld [vmem:[#allocation8 + $0x138] sm:$0xff]
      %v195 = vld [vmem:[#allocation8 + $0x140] sm:$0xff]
      %v196 = vld [vmem:[#allocation8 + $0x148] sm:$0xff]
      %v197 = vld [vmem:[#allocation8 + $0x150] sm:$0xff]
      %v198 = vld [vmem:[#allocation8 + $0x158] sm:$0xff]
      %v199 = vld [vmem:[#allocation8 + $0x160] sm:$0xff]
      %v200 = vld [vmem:[#allocation8 + $0x168] sm:$0xff]
      %v201 = vld [vmem:[#allocation8 + $0x170] sm:$0xff]
      %v202 = vld [vmem:[#allocation8 + $0x178] sm:$0xff]
      %v203 = vld [vmem:[#allocation8 + $0x180] sm:$0xff]
      %v204 = vld [vmem:[#allocation8 + $0x188] sm:$0xff]
      %v205 = vld [vmem:[#allocation8 + $0x190] sm:$0xff]
      %v206 = vld [vmem:[#allocation8 + $0x198] sm:$0xff]
      %v207 = vld [vmem:[#allocation8 + $0x1a0] sm:$0xff]
      %v208 = vld [vmem:[#allocation8 + $0x1a8] sm:$0xff]
      %v209 = vld [vmem:[#allocation8 + $0x1b0] sm:$0xff]
      %v210 = vld [vmem:[#allocation8 + $0x1b8] sm:$0xff]
      %v211 = vld [vmem:[#allocation8 + $0x1c0] sm:$0xff]
      %v212 = vld [vmem:[#allocation8 + $0x1c8] sm:$0xff]
      %v213 = vld [vmem:[#allocation8 + $0x1d0] sm:$0xff]
      %v214 = vld [vmem:[#allocation8 + $0x1d8] sm:$0xff]
      %v215 = vld [vmem:[#allocation8 + $0x1e0] sm:$0xff]
      %v216 = vld [vmem:[#allocation8 + $0x1e8] sm:$0xff]
      %v217 = vld [vmem:[#allocation8 + $0x1f0] sm:$0xff]
      %v218 = vld [vmem:[#allocation8 + $0x1f8] sm:$0xff]
      %v219 = vld [vmem:[#allocation3] sm:$0xf]
      %v220 = vld [vmem:[#allocation10] sm:$0xff]
      %v221 = vld [vmem:[#allocation10 + $0x8] sm:$0xff]
      %v222 = vld [vmem:[#allocation10 + $0x10] sm:$0xff]
      %v223 = vld [vmem:[#allocation10 + $0x18] sm:$0xff]
      %v224 = vld [vmem:[#allocation10 + $0x20] sm:$0xff]
      %v225 = vld [vmem:[#allocation10 + $0x28] sm:$0xff]
      %v226 = vld [vmem:[#allocation10 + $0x30] sm:$0xff]
      %v227 = vld [vmem:[#allocation10 + $0x38] sm:$0xff]
      %v228 = vld [vmem:[#allocation10 + $0x40] sm:$0xff]
      %v229 = vld [vmem:[#allocation10 + $0x48] sm:$0xff]
      %v230 = vld [vmem:[#allocation10 + $0x50] sm:$0xff]
      %v231 = vld [vmem:[#allocation10 + $0x58] sm:$0xff]
      %v232 = vld [vmem:[#allocation10 + $0x60] sm:$0xff]
      %v233 = vld [vmem:[#allocation10 + $0x68] sm:$0xff]
      %v234 = vld [vmem:[#allocation10 + $0x70] sm:$0xff]
      %v235 = vld [vmem:[#allocation10 + $0x78] sm:$0xff]
      %v236 = vld [vmem:[#allocation10 + $0x80] sm:$0xff]
      %v237 = vld [vmem:[#allocation10 + $0x88] sm:$0xff]
      %v238 = vld [vmem:[#allocation10 + $0x90] sm:$0xff]
      %v239 = vld [vmem:[#allocation10 + $0x98] sm:$0xff]
      %v240 = vld [vmem:[#allocation10 + $0xa0] sm:$0xff]
      %v241 = vld [vmem:[#allocation10 + $0xa8] sm:$0xff]
      %v242 = vld [vmem:[#allocation10 + $0xb0] sm:$0xff]
      %v243 = vld [vmem:[#allocation10 + $0xb8] sm:$0xff]
      %v244 = vld [vmem:[#allocation10 + $0xc0] sm:$0xff]
      %v245 = vld [vmem:[#allocation10 + $0xc8] sm:$0xff]
      %v246 = vld [vmem:[#allocation10 + $0xd0] sm:$0xff]
      %v247 = vld [vmem:[#allocation10 + $0xd8] sm:$0xff]
      %v248 = vld [vmem:[#allocation10 + $0xe0] sm:$0xff]
      %v249 = vld [vmem:[#allocation10 + $0xe8] sm:$0xff]
      %v250 = vld [vmem:[#allocation10 + $0xf0] sm:$0xff]
      %v251 = vld [vmem:[#allocation10 + $0xf8] sm:$0xff]
      %v252 = vld [vmem:[#allocation10 + $0x100] sm:$0xff]
      %v253 = vld [vmem:[#allocation10 + $0x108] sm:$0xff]
      %v254 = vld [vmem:[#allocation10 + $0x110] sm:$0xff]
      %v255 = vld [vmem:[#allocation10 + $0x118] sm:$0xff]
      %v256 = vld [vmem:[#allocation10 + $0x120] sm:$0xff]
      %v257 = vld [vmem:[#allocation10 + $0x128] sm:$0xff]
      %v258 = vld [vmem:[#allocation10 + $0x130] sm:$0xff]
      %v259 = vld [vmem:[#allocation10 + $0x138] sm:$0xff]
      %v260 = vld [vmem:[#allocation10 + $0x140] sm:$0xff]
      %v261 = vld [vmem:[#allocation10 + $0x148] sm:$0xff]
      %v262 = vld [vmem:[#allocation10 + $0x150] sm:$0xff]
      %v263 = vld [vmem:[#allocation10 + $0x158] sm:$0xff]
      %v264 = vld [vmem:[#allocation10 + $0x160] sm:$0xff]
      %v265 = vld [vmem:[#allocation10 + $0x168] sm:$0xff]
      %v266 = vld [vmem:[#allocation10 + $0x170] sm:$0xff]
      %v267 = vld [vmem:[#allocation10 + $0x178] sm:$0xff]
      %v268 = vld [vmem:[#allocation10 + $0x180] sm:$0xff]
      %v269 = vld [vmem:[#allocation10 + $0x188] sm:$0xff]
      %v270 = vld [vmem:[#allocation10 + $0x190] sm:$0xff]
      %v271 = vld [vmem:[#allocation10 + $0x198] sm:$0xff]
      %v272 = vld [vmem:[#allocation10 + $0x1a0] sm:$0xff]
      %v273 = vld [vmem:[#allocation10 + $0x1a8] sm:$0xff]
      %v274 = vld [vmem:[#allocation10 + $0x1b0] sm:$0xff]
      %v275 = vld [vmem:[#allocation10 + $0x1b8] sm:$0xff]
      %v276 = vld [vmem:[#allocation10 + $0x1c0] sm:$0xff]
      %v277 = vld [vmem:[#allocation10 + $0x1c8] sm:$0xff]
      %v278 = vld [vmem:[#allocation10 + $0x1d0] sm:$0xff]
      %v279 = vld [vmem:[#allocation10 + $0x1d8] sm:$0xff]
      %v280 = vld [vmem:[#allocation10 + $0x1e0] sm:$0xff]
      %v281 = vld [vmem:[#allocation10 + $0x1e8] sm:$0xff]
      %v282 = vld [vmem:[#allocation10 + $0x1f0] sm:$0xff]
      %v283 = vld [vmem:[#allocation10 + $0x1f8] sm:$0xff]
      %v286 = vunpack.c.l.s4 1983009808
      %v287 = vunpack.c.0.s8 %v286
      %v288 = vlaneseq
      %v289 = vshrl.u32 %v288, 7
      %v290 = vsub.s32 %v287, %v289
      %v291 = vrot.slane %v219, %v290
      %v292 = vcombine.high %v291, %v291
      %295 = vmatprep.subr.mxu0 %v221
      %296 = vmatpush1.msra.mxu0 %v220
      %297 = vmatprep.subr.mxu0 %v223
      %298 = vmatpush1.msra.mxu0 %v222
      %299 = vmatprep.subr.mxu0 %v225
      %300 = vmatpush1.msra.mxu0 %v224
      %301 = vmatprep.subr.mxu0 %v227
      %302 = vmatpush1.msra.mxu0 %v226
      %303 = vmatprep.subr.mxu0 %v229
      %304 = vmatpush1.msra.mxu0 %v228
      %305 = vmatprep.subr.mxu0 %v231
      %306 = vmatpush1.msra.mxu0 %v230
      %307 = vmatprep.subr.mxu0 %v233
      %308 = vmatpush1.msra.mxu0 %v232
      %309 = vmatprep.subr.mxu0 %v235
      %310 = vmatpush1.msra.mxu0 %v234
      %311 = vmatprep.subr.mxu0 %v237
      %312 = vmatpush1.msra.mxu0 %v236
      %313 = vmatprep.subr.mxu0 %v239
      %314 = vmatpush1.msra.mxu0 %v238
      %315 = vmatprep.subr.mxu0 %v241
      %316 = vmatpush1.msra.mxu0 %v240
      %317 = vmatprep.subr.mxu0 %v243
      %318 = vmatpush1.msra.mxu0 %v242
      %319 = vmatprep.subr.mxu0 %v245
      %320 = vmatpush1.msra.mxu0 %v244
      %321 = vmatprep.subr.mxu0 %v247
      %322 = vmatpush1.msra.mxu0 %v246
      %323 = vmatprep.subr.mxu0 %v249
      %324 = vmatpush1.msra.mxu0 %v248
      %325 = vmatprep.subr.mxu0 %v251
      %326 = vmatpush1.msra.mxu0 %v250
      %327 = vmatprep.subr.mxu0 %v253
      %328 = vmatpush1.msra.mxu0 %v252
      %329 = vmatprep.subr.mxu0 %v255
      %330 = vmatpush1.msra.mxu0 %v254
      %331 = vmatprep.subr.mxu0 %v257
      %332 = vmatpush1.msra.mxu0 %v256
      %333 = vmatprep.subr.mxu0 %v259
      %334 = vmatpush1.msra.mxu0 %v258
      %335 = vmatprep.subr.mxu0 %v261
      %336 = vmatpush1.msra.mxu0 %v260
      %337 = vmatprep.subr.mxu0 %v263
      %338 = vmatpush1.msra.mxu0 %v262
      %339 = vmatprep.subr.mxu0 %v265
      %340 = vmatpush1.msra.mxu0 %v264
      %341 = vmatprep.subr.mxu0 %v267
      %342 = vmatpush1.msra.mxu0 %v266
      %343 = vmatprep.subr.mxu0 %v269
      %344 = vmatpush1.msra.mxu0 %v268
      %345 = vmatprep.subr.mxu0 %v271
      %346 = vmatpush1.msra.mxu0 %v270
      %347 = vmatprep.subr.mxu0 %v273
      %348 = vmatpush1.msra.mxu0 %v272
      %349 = vmatprep.subr.mxu0 %v275
      %350 = vmatpush1.msra.mxu0 %v274
      %351 = vmatprep.subr.mxu0 %v277
      %352 = vmatpush1.msra.mxu0 %v276
      %353 = vmatprep.subr.mxu0 %v279
      %354 = vmatpush1.msra.mxu0 %v278
      %355 = vmatprep.subr.mxu0 %v281
      %356 = vmatpush1.msra.mxu0 %v280
      %357 = vmatprep.subr.mxu0 %v283
      %358 = vmatpush1.msra.mxu0 %v282
      %359 = vmatprep.mubr.f32.mxu0 %v292
      %360 = vmatmul.mubr.f32.gmra.mrb[0].mxu0 %v291
      %v361 = vpop.f32.mrb[0].mxu0
      %v362 = vadd.f32 0.0, %v361
      %v363 = vpop.f32.mrb[0].mxu0
      %v364 = vadd.f32 0.0, %v363
      %365 = vdwg.mxu0
      %v368 = vunpack.c.l.s4 1983009808
      %v369 = vunpack.c.0.s8 %v368
      %v370 = vlaneseq
      %v371 = vshrl.u32 %v370, 7
      %v372 = vsub.s32 %v369, %v371
      %v373 = vrot.slane %v154, %v372
      %v374 = vcombine.high %v373, %v373
      %377 = vmatprep.subr.mxu0 %v156
      %378 = vmatpush1.msra.mxu0 %v155
      %379 = vmatprep.subr.mxu0 %v158
      %380 = vmatpush1.msra.mxu0 %v157
      %381 = vmatprep.subr.mxu0 %v160
      %382 = vmatpush1.msra.mxu0 %v159
      %383 = vmatprep.subr.mxu0 %v162
      %384 = vmatpush1.msra.mxu0 %v161
      %385 = vmatprep.subr.mxu0 %v164
      %386 = vmatpush1.msra.mxu0 %v163
      %387 = vmatprep.subr.mxu0 %v166
      %388 = vmatpush1.msra.mxu0 %v165
      %389 = vmatprep.subr.mxu0 %v168
      %390 = vmatpush1.msra.mxu0 %v167
      %391 = vmatprep.subr.mxu0 %v170
      %392 = vmatpush1.msra.mxu0 %v169
      %393 = vmatprep.subr.mxu0 %v172
      %394 = vmatpush1.msra.mxu0 %v171
      %395 = vmatprep.subr.mxu0 %v174
      %396 = vmatpush1.msra.mxu0 %v173
      %397 = vmatprep.subr.mxu0 %v176
      %398 = vmatpush1.msra.mxu0 %v175
      %399 = vmatprep.subr.mxu0 %v178
      %400 = vmatpush1.msra.mxu0 %v177
      %401 = vmatprep.subr.mxu0 %v180
      %402 = vmatpush1.msra.mxu0 %v179
      %403 = vmatprep.subr.mxu0 %v182
      %404 = vmatpush1.msra.mxu0 %v181
      %405 = vmatprep.subr.mxu0 %v184
      %406 = vmatpush1.msra.mxu0 %v183
      %407 = vmatprep.subr.mxu0 %v186
      %408 = vmatpush1.msra.mxu0 %v185
      %409 = vmatprep.subr.mxu0 %v188
      %410 = vmatpush1.msra.mxu0 %v187
      %411 = vmatprep.subr.mxu0 %v190
      %412 = vmatpush1.msra.mxu0 %v189
      %413 = vmatprep.subr.mxu0 %v192
      %414 = vmatpush1.msra.mxu0 %v191
      %415 = vmatprep.subr.mxu0 %v194
      %416 = vmatpush1.msra.mxu0 %v193
      %417 = vmatprep.subr.mxu0 %v196
      %418 = vmatpush1.msra.mxu0 %v195
      %419 = vmatprep.subr.mxu0 %v198
      %420 = vmatpush1.msra.mxu0 %v197
      %421 = vmatprep.subr.mxu0 %v200
      %422 = vmatpush1.msra.mxu0 %v199
      %423 = vmatprep.subr.mxu0 %v202
      %424 = vmatpush1.msra.mxu0 %v201
      %425 = vmatprep.subr.mxu0 %v204
      %426 = vmatpush1.msra.mxu0 %v203
      %427 = vmatprep.subr.mxu0 %v206
      %428 = vmatpush1.msra.mxu0 %v205
      %429 = vmatprep.subr.mxu0 %v208
      %430 = vmatpush1.msra.mxu0 %v207
      %431 = vmatprep.subr.mxu0 %v210
      %432 = vmatpush1.msra.mxu0 %v209
      %433 = vmatprep.subr.mxu0 %v212
      %434 = vmatpush1.msra.mxu0 %v211
      %435 = vmatprep.subr.mxu0 %v214
      %436 = vmatpush1.msra.mxu0 %v213
      %437 = vmatprep.subr.mxu0 %v216
      %438 = vmatpush1.msra.mxu0 %v215
      %439 = vmatprep.subr.mxu0 %v218
      %440 = vmatpush1.msra.mxu0 %v217
      %441 = vmatprep.mubr.f32.mxu0 %v374
      %442 = vmatmul.mubr.f32.gmra.mrb[0].mxu0 %v373
      %v443 = vpop.f32.mrb[0].mxu0
      %v444 = vadd.f32 %v362, %v443
      %v445 = vpop.f32.mrb[0].mxu0
      %v446 = vadd.f32 %v364, %v445
      %447 = vdwg.mxu0
      %s448 = sld [smem:[#allocation4]]
      %v449 = vstv %s448
      %v450 = vadd.f32 %v444, %v449
      %v451 = vadd.f32 %v446, %v449
      %v452 = vxor.u32 %v450, 2147483648
      %v453 = vxor.u32 %v451, 2147483648
      %v454 = vmul.f32 %v452, 1.442695
      %v455 = vpow.pop %v454
      %v456 = vmul.f32 %v453, 1.442695
      %v457 = vpow.pop %v456
      %v458 = vadd.f32 %v455, 1.0
      %v459 = vadd.f32 %v457, 1.0
      %v460 = vrcp.pop %v458
      %v461 = vmul.f32 1.0, %v460
      %v462 = vrcp.pop %v459
      %v463 = vmul.f32 1.0, %v462
      %v464 = vld [vmem:[%s4] sm:$0x3]
      %v466 = vlaneseq
      %v467 = vshrl.u32 %v466, 7
      %v468 = vsub.s32 0, %v467
      %v469 = vrot.slane %v464, %v468
      %v470 = vlaneseq
      %v471 = vshrl.u32 %v470, 7
      %v472 = vsub.s32 1, %v471
      %v473 = vrot.slane %v464, %v472
      %v476 = vmul.f32 %v461, %v469
      %v477 = vmul.f32 %v463, %v473
      %v480 = vcombine.low %v476, %v477
      %v482 = vunpack.c.l.s4 1983009808
      %v483 = vunpack.c.0.s8 %v482
      %v484 = vlaneseq
      %v485 = vshrl.u32 %v484, 7
      %v486 = vsub.s32 %v483, %v485
      %v487 = vrot.slane %v480, %v486
      %489 = vst [vmem:[#allocation11] sm:$0xf] %v487
    $region45: #{tpu_custom_call.1} parent=1 // pred_fallthru
      _
    // Predicated region
    $region46: #{tpu_custom_call.1} parent=1 // pred_check
      _
    $region47: #{tpu_custom_call.1} parent=1 // pred_check_branch
      %491 = sbr.rel (0) target = $region49
    $region48: #{tpu_custom_call.1} parent=1 // pred_region
      %s493 = ssub.s32 64, 64
      %494 = vsyncadd [#allocation7], %s493
      %s496 = sshll.u32 [#allocation11], 4
      %s497 = int_to_ptr.vmem [resolvable:$true] %s496
      %499 = dma.vmem_to_hbm [thread:$0]  %s497, 64, %s5, [#allocation7]
    $region49: #{tpu_custom_call.1} parent=1 // pred_fallthru
      _
    // Predicated region
    $region50: #{tpu_custom_call.1} parent=1 // pred_check
      _
    $region51: #{tpu_custom_call.1} parent=1 // pred_check_branch
      %501 = sbr.rel (0) target = $region53
    $region52: #{tpu_custom_call.1} parent=1 // pred_region
      %502 = dma.done [#allocation7], 64
    $region53: #{tpu_custom_call.1} parent=1 // pred_fallthru
      _
    %503 = vsyncpa [#allocation6], 1
    %504 = vsyncpa [#allocation9], 1
    %505 = vsyncpa [#allocation7], 1

</llo_original>
